<compile_context>
chip_gen: v7x
topology: tpu7x:2x2x1
jax: 0.10.0
libtpu: 0.0.40
codegen_flags: <defaults>
</compile_context>

<pallas_src>
import functools

import numpy as np
import jax
import jax.numpy as jnp
from jax import lax
from jax.experimental import pallas as pl
from jax.experimental.pallas import tpu as pltpu


# ------------------------------ small helpers -------------------------------
def _round_up(x, m):
    return ((x + m - 1) // m) * m


def _vmem_budget():
    """(per-block byte budget, scoped-VMEM limit), generation aware."""
    cap = 64 * 1024 * 1024
    try:
        if jax.devices()[0].platform == "tpu":
            cap = int(pltpu.get_tpu_info().vmem_capacity_bytes)
    except Exception:
        pass
    if cap >= 100 * 1024 * 1024:               # v5e / v6e: 128 MiB physical VMEM
        return 4 * 1024 * 1024, 64 * 1024 * 1024
    return 2 * 1024 * 1024, 32 * 1024 * 1024   # v7x (64 MiB per TC) or unknown


def _plan_row_tiles(R, L, itemsize, budget_bytes, nsplit_max=1):
    """Legal row-tile size (multiple of the sublane packing, or the full dim),
    sequential steps per split, split count, and total number of real tiles."""
    align = max(8, 32 // max(1, itemsize))      # sublane packing factor per dtype
    cap = max(align, ((budget_bytes // max(1, L * itemsize)) // align) * align)
    tr = min(_round_up(pl.cdiv(R, nsplit_max), align), cap)
    if tr >= R:
        tr = R                                   # one full-extent block (always legal)
    n_tiles = pl.cdiv(R, tr)
    nsplit = min(nsplit_max, n_tiles)
    n_inner = pl.cdiv(n_tiles, nsplit)
    return tr, n_inner, nsplit, n_tiles


# --------------------- in-kernel counter-based RNG bits ---------------------
def _mix32(x):
    """murmur3-style finalizer (full avalanche) on uint32 arrays."""
    x = x ^ (x >> 16)
    x = x * np.uint32(0x7FEB352D)
    x = x ^ (x >> 15)
    x = x * np.uint32(0x846CA68B)
    x = x ^ (x >> 16)
    return x


def _popcount32(x):
    """SWAR popcount on uint32 arrays (values 0..32)."""
    x = x - ((x >> 1) & np.uint32(0x55555555))
    x = (x & np.uint32(0x33333333)) + ((x >> 2) & np.uint32(0x33333333))
    x = (x + (x >> 4)) & np.uint32(0x0F0F0F0F)
    return (x * np.uint32(0x01010101)) >> 24


# noise = (Binomial(32,1/2) - 16 + Uniform(0,1) - 1/2) / sqrt(8 + 1/12)  ~  N(0,1)
_NOISE_SCALE = np.float32(1.0 / np.sqrt(8.0 + 1.0 / 12.0))


def _mix32_py(v):
    v &= 0xFFFFFFFF
    v ^= v >> 16
    v = (v * 0x7FEB352D) & 0xFFFFFFFF
    v ^= v >> 15
    v = (v * 0x846CA68B) & 0xFFFFFFFF
    v ^= v >> 16
    return v


def _seed_pair(seed):
    """Two well-mixed 32-bit stream seeds from the user seed (no additive
    seed+step collisions between different user seeds)."""
    s = int(seed) & 0xFFFFFFFF
    a = _mix32_py(s ^ 0x9E3779B9)
    b = _mix32_py(s ^ 0x85EBCA6B ^ a)
    to_i32 = lambda u: u - (1 << 32) if u >= (1 << 31) else u
    return jnp.asarray([to_i32(a), to_i32(b)], dtype=jnp.int32)


# ---------------------------------------------------------------------------
# Pass 1: per-feature moments (sum, sum of squares) over dims (0, 1)
# ---------------------------------------------------------------------------
def _moments_kernel(x_ref, sum_ref, sumsq_ref, *, n_inner, tr, total_rows):
    i = pl.program_id(1)

    @pl.when(i == 0)
    def _init():
        sum_ref[...] = jnp.zeros_like(sum_ref)
        sumsq_ref[...] = jnp.zeros_like(sumsq_ref)

    # Mask rows beyond the real array (ragged last tile / rounded-up split tiles).
    # The DMA block index is clamped in the index_map, so the mask here must use
    # the UNCLAMPED logical tile id: fully-rounded-up tiles then contribute zero.
    row0 = (pl.program_id(0) * n_inner + i) * tr
    rows = lax.broadcasted_iota(jnp.int32, x_ref.shape, 0) + row0
    xn = jnp.where(rows < total_rows,
                   jnp.nan_to_num(x_ref[...].astype(jnp.float32)),
                   jnp.float32(0.0))
    sum_ref[...] += jnp.sum(xn, axis=0, keepdims=True)[None]
    sumsq_ref[...] += jnp.sum(xn * xn, axis=0, keepdims=True)[None]


def compute_feature_std(x, budget_bytes=None, vmem_limit=None):
    """std(nan_to_num(x), dims=(0,1)), unbiased (torch.std default for N>1;
    returns 0 rather than NaN when B*S == 1).  x: (B, S, F)."""
    B, S, F = x.shape
    N = B * S
    if budget_bytes is None or vmem_limit is None:
        b, v = _vmem_budget()
        budget_bytes = budget_bytes or b
        vmem_limit = vmem_limit or v

    x2 = x.reshape(N, F)
    # Lane-dense fold: pack 128//F consecutive rows into the 128-lane axis so the
    # HBM-bound reduction runs with full lane / DMA-row utilization for small F.
    if F < 128 and 128 % F == 0 and N % (128 // F) == 0:
        k = 128 // F
        R, L = N // k, 128
        xv = x2.reshape(R, L)
    else:
        k, R, L = 1, N, F
        xv = x2

    # 2-way "parallel" split feeds both TensorCores on v7x (harmless elsewhere).
    tr, n_inner, nsplit, n_tiles = _plan_row_tiles(
        R, L, x.dtype.itemsize, budget_bytes, nsplit_max=2)

    kernel = functools.partial(_moments_kernel, n_inner=n_inner, tr=tr, total_rows=R)

    def x_map(p, i):
        # Clamp so rounded-up logical tiles never DMA fully out of bounds.
        return (jnp.minimum(p * n_inner + i, n_tiles - 1), 0)

    sums, sumsqs = pl.pallas_call(
        kernel,
        out_shape=(jax.ShapeDtypeStruct((nsplit, 1, L), jnp.float32),
                   jax.ShapeDtypeStruct((nsplit, 1, L), jnp.float32)),
        grid_spec=pltpu.PrefetchScalarGridSpec(
            num_scalar_prefetch=0,
            grid=(nsplit, n_inner),
            in_specs=[pl.BlockSpec((tr, L), x_map)],
            out_specs=[pl.BlockSpec((1, 1, L), lambda p, i: (p, 0, 0)),
                       pl.BlockSpec((1, 1, L), lambda p, i: (p, 0, 0))],
        ),
        compiler_params=pltpu.CompilerParams(
            dimension_semantics=("parallel", "arbitrary"),
            vmem_limit_bytes=vmem_limit,
        ),
    )(xv)

    s = jnp.sum(sums.reshape(nsplit, L), axis=0)
    sq = jnp.sum(sumsqs.reshape(nsplit, L), axis=0)
    if k > 1:                                   # un-fold lanes -> per-feature totals
        s = s.reshape(k, F).sum(axis=0)
        sq = sq.reshape(k, F).sum(axis=0)
    mean = s / N
    denom = max(N - 1, 1)
    # Single-pass moments (one HBM read of X).  f32 cancellation only matters when
    # |mean| >> std; switch to a centered second pass if exact torch parity matters.
    var = jnp.maximum(sq - N * mean * mean, 0.0) / denom
    return jnp.sqrt(var)


# ---------------------------------------------------------------------------
# Pass 2: out = x + coeff * (noise - 0.5), noise drawn in-kernel (hash RNG)
# ---------------------------------------------------------------------------
def _apply_kernel(seed_ref, x_ref, c_ref, o_ref, *, tr, L, R):
    r = pl.program_id(0)
    b = pl.program_id(1)
    row = lax.broadcasted_iota(jnp.int32, (tr, L), 0) + r * tr
    lane = lax.broadcasted_iota(jnp.int32, (tr, L), 1)
    # Globally unique per-element counter (uniqueness mod 2**32).
    idx = ((b * R + row) * L + lane).astype(jnp.uint32)
    s1 = seed_ref[0].astype(jnp.uint32)
    s2 = seed_ref[1].astype(jnp.uint32)
    # approx N(0,1): standardized Binomial(32,1/2) (popcount of a random word)
    # smoothed with an independent Uniform(0,1).  Mean 0, variance 1.
    binom = _popcount32(_mix32(idx ^ s1)).astype(jnp.int32).astype(jnp.float32)
    unif = (_mix32(idx ^ s2) >> 8).astype(jnp.int32).astype(jnp.float32) \
        * np.float32(1.0 / (1 << 24))
    noise = (binom - np.float32(16.0) + unif - np.float32(0.5)) * _NOISE_SCALE
    pert = (noise - np.float32(0.5)) * c_ref[...]       # (randn - 0.5) * std * trigger
    o_ref[...] = (x_ref[...].astype(jnp.float32) + pert[None]).astype(o_ref.dtype)


def _apply_perturbation(xr, cr, seed_pair, *, budget_bytes, vmem_limit):
    """xr: (B, R, L) view of X, cr: (R, L) = trigger*std view."""
    B, R, L = xr.shape
    tr, n_r, _, _ = _plan_row_tiles(R, L, xr.dtype.itemsize, budget_bytes, nsplit_max=1)
    kernel = functools.partial(_apply_kernel, tr=tr, L=L, R=R)
    return pl.pallas_call(
        kernel,
        out_shape=jax.ShapeDtypeStruct((B, R, L), xr.dtype),
        grid_spec=pltpu.PrefetchScalarGridSpec(
            num_scalar_prefetch=1,
            # r OUTER, b INNER: coeff's block index (r, 0) is constant across the
            # inner batch axis, so each coeff tile is DMA'd once per row-tile
            # instead of once per batch (~1/3 less Pass-2 input traffic).
            grid=(n_r, B),
            in_specs=[
                pl.BlockSpec((1, tr, L), lambda r, b, s: (b, r, 0)),
                pl.BlockSpec((tr, L), lambda r, b, s: (r, 0)),
            ],
            out_specs=pl.BlockSpec((1, tr, L), lambda r, b, s: (b, r, 0)),
        ),
        compiler_params=pltpu.CompilerParams(
            dimension_semantics=("parallel", "parallel"),
            vmem_limit_bytes=vmem_limit,
        ),
    )(seed_pair, xr, cr)


# ---------------------------------------------------------------------------
# Public wrapper: OptTrigger.forward (non-split-class path)
# ---------------------------------------------------------------------------
def opt_trigger_forward(x, trigger, seed=0):
    """x: (B, S, F) (may contain NaN), trigger: (S, F).  Returns x + trigger*pert
    with pert = (noise - 0.5) * std, noise ~ N(0,1) drawn in-kernel (torch.randn's
    exact stream is not reproducible in JAX)."""
    B, S, F = x.shape
    assert trigger.shape == (S, F)
    budget_bytes, vmem_limit = _vmem_budget()

    std = compute_feature_std(x, budget_bytes, vmem_limit)        # (F,)   pass 1
    coeff = trigger.astype(jnp.float32) * std[None, :]            # (S, F) tiny glue

    if (S * F) % 128 == 0:
        # Lane-dense fold: last dim is exactly 128 lanes -> unmasked vector stores.
        R, L = (S * F) // 128, 128
    else:
        # TODO(synk): pad S*F up to a multiple of 128 for lane-dense stores once
        # the extra pad/slice HBM copies are worth it; this layout is correct but
        # uses lane-masked stores when F < 128.
        R, L = S, F
    xr = x.reshape(B, R, L)
    cr = coeff.reshape(R, L)

    out = _apply_perturbation(xr, cr, _seed_pair(seed),
                              budget_bytes=budget_bytes, vmem_limit=vmem_limit)
    return out.reshape(B, S, F)


# ---------------------------------------------------------------------------
if __name__ == "__main__":
    # Small shapes consistent with a time-series X_shape = (seq, features).
    B, S, F = 2, 8, 32
    key = jax.random.PRNGKey(0)
    k_x, k_trig, k_nan = jax.random.split(key, 3)

    x = jax.random.normal(k_x, (B, S, F), dtype=jnp.float32)
    nan_mask = jax.random.uniform(k_nan, (B, S, F)) < 0.05        # missing values
    x = jnp.where(nan_mask, jnp.nan, x)
    trigger = jax.random.uniform(k_trig, (S, F), dtype=jnp.float32)

    out = jax.block_until_ready(opt_trigger_forward(x, trigger, seed=0))
    assert out.shape == (B, S, F)

    # 1) Pass-1 std matches torch.std(nan_to_num(x), dim=[0,1]) (unbiased).
    std_k = jax.block_until_ready(compute_feature_std(x))
    std_ref = jnp.std(jnp.nan_to_num(x), axis=(0, 1), ddof=1)
    assert jnp.allclose(std_k, std_ref, atol=1e-5, rtol=1e-5), "std mismatch"

    # 2) NaN positions preserved, everything else finite.
    assert bool(jnp.all(jnp.isnan(out) == jnp.isnan(x)))
    assert bool(jnp.all(jnp.isfinite(jnp.where(jnp.isnan(x), 0.0, out))))

    # 3) Recovered noise ~ N(0, 1) (distributional check only).
    coeff_full = trigger[None] * std_ref[None, None, :]
    valid = (~jnp.isnan(x)) & (coeff_full > 1e-2)
    safe_coeff = jnp.where(valid, coeff_full, 1.0)
    noise_rec = jnp.where(valid, (out - x) / safe_coeff + 0.5, 0.0)
    cnt = jnp.sum(valid)
    mean_n = jnp.sum(noise_rec) / cnt
    var_n = jnp.sum(jnp.where(valid, (noise_rec - mean_n) ** 2, 0.0)) / cnt
    assert bool(jnp.abs(mean_n) < 0.3), "recovered noise mean off"
    assert bool(jnp.abs(jnp.sqrt(var_n) - 1.0) < 0.3), "recovered noise std off"

    # 4) Exercise the ragged / lane-masked fallback path at a tiny awkward shape.
    x2 = jax.random.normal(k_x, (3, 7, 5), dtype=jnp.float32)
    trig2 = jax.random.uniform(k_trig, (7, 5), dtype=jnp.float32)
    out2 = jax.block_until_ready(opt_trigger_forward(x2, trig2, seed=3))
    assert out2.shape == (3, 7, 5)
    assert bool(jnp.all(jnp.isfinite(out2)))
    std2_k = compute_feature_std(x2)
    std2_ref = jnp.std(jnp.nan_to_num(x2), axis=(0, 1), ddof=1)
    assert jnp.allclose(std2_k, std2_ref, atol=1e-4, rtol=1e-4), "std mismatch (ragged)"

    print("KERNEL_OK")
</pallas_src>

<mosaic_0001>
module attributes {stable_mosaic.version = 11 : i64} {
  func.func @_moments_kernel(%arg0: i32, %arg1: i32, %arg2: memref<4x128xf32, #tpu.memory_space<vmem>>, %arg3: memref<1x1x128xf32, #tpu.memory_space<vmem>>, %arg4: memref<1x1x128xf32, #tpu.memory_space<vmem>>) attributes {dimension_semantics = [#tpu.dimension_semantics<parallel>, #tpu.dimension_semantics<arbitrary>], iteration_bounds = array<i64: 1, 1>, scalar_prefetch = 0 : i64, scratch_operands = 0 : i64, tpu.core_type = #tpu.core_type<tc>, window_params = [{transform_indices = @transform_0, window_bounds = array<i64: 4, 128>}, {transform_indices = @transform_1, window_bounds = array<i64: 1, 1, 128>}, {transform_indices = @transform_2, window_bounds = array<i64: 1, 1, 128>}]} {
    %c0_i32 = arith.constant 0 : i32
    %0 = arith.cmpi eq, %arg1, %c0_i32 : i32
    %1 = arith.extui %0 : i1 to i32
    %c0_i32_0 = arith.constant 0 : i32
    %2 = arith.cmpi ne, %1, %c0_i32_0 : i32
    scf.if %2 {
      %cst_22 = arith.constant 0.000000e+00 : f32
      %38 = vector.broadcast %cst_22 : f32 to vector<1x1x128xf32>
      %c0_23 = arith.constant 0 : index
      %c0_24 = arith.constant 0 : index
      %c0_25 = arith.constant 0 : index
      %39 = vector.load %arg3[%c0_23, %c0_24, %c0_25] : memref<1x1x128xf32, #tpu.memory_space<vmem>>, vector<1x1x128xf32>
      tpu.vector_store %arg3[%c0_23, %c0_24, %c0_25], %38 {strides = array<i32>} : memref<1x1x128xf32, #tpu.memory_space<vmem>>, vector<1x1x128xf32>,
      %cst_26 = arith.constant 0.000000e+00 : f32
      %40 = vector.broadcast %cst_26 : f32 to vector<1x1x128xf32>
      %c0_27 = arith.constant 0 : index
      %c0_28 = arith.constant 0 : index
      %c0_29 = arith.constant 0 : index
      %41 = vector.load %arg4[%c0_27, %c0_28, %c0_29] : memref<1x1x128xf32, #tpu.memory_space<vmem>>, vector<1x1x128xf32>
      tpu.vector_store %arg4[%c0_27, %c0_28, %c0_29], %40 {strides = array<i32>} : memref<1x1x128xf32, #tpu.memory_space<vmem>>, vector<1x1x128xf32>,
    } else {
    }
    %c1_i32 = arith.constant 1 : i32
    %3 = arith.muli %arg0, %c1_i32 : i32
    %4 = arith.addi %3, %arg1 : i32
    %c4_i32 = arith.constant 4 : i32
    %5 = arith.muli %4, %c4_i32 : i32
    %6 = tpu.iota {dimensions = array<i32: 0>} : vector<4x128xi32>
    %7 = vector.broadcast %5 : i32 to vector<4x128xi32>
    %8 = arith.addi %6, %7 : vector<4x128xi32>
    %c4_i32_1 = arith.constant 4 : i32
    %9 = vector.broadcast %c4_i32_1 : i32 to vector<4x128xi32>
    %10 = arith.cmpi slt, %8, %9 : vector<4x128xi32>
    %c0 = arith.constant 0 : index
    %c0_2 = arith.constant 0 : index
    %11 = vector.load %arg2[%c0, %c0_2] : memref<4x128xf32, #tpu.memory_space<vmem>>, vector<4x128xf32>
    %12 = arith.cmpf one, %11, %11 : vector<4x128xf32>
    %cst = arith.constant 0.000000e+00 : f32
    %13 = vector.broadcast %cst : f32 to vector<4x128xf32>
    %14 = arith.select %12, %13, %11 : vector<4x128xi1>, vector<4x128xf32>
    %cst_3 = arith.constant 0x7F800000 : f32
    %15 = vector.broadcast %cst_3 : f32 to vector<4x128xf32>
    %16 = arith.cmpf oeq, %14, %15 : vector<4x128xf32>
    %cst_4 = arith.constant 3.40282347E+38 : f32
    %17 = vector.broadcast %cst_4 : f32 to vector<4x128xf32>
    %18 = arith.select %16, %17, %14 : vector<4x128xi1>, vector<4x128xf32>
    %cst_5 = arith.constant 0xFF800000 : f32
    %19 = vector.broadcast %cst_5 : f32 to vector<4x128xf32>
    %20 = arith.cmpf oeq, %18, %19 : vector<4x128xf32>
    %cst_6 = arith.constant -3.40282347E+38 : f32
    %21 = vector.broadcast %cst_6 : f32 to vector<4x128xf32>
    %22 = arith.select %20, %21, %18 : vector<4x128xi1>, vector<4x128xf32>
    %cst_7 = arith.constant 0.000000e+00 : f32
    %23 = vector.broadcast %cst_7 : f32 to vector<4x128xf32>
    %24 = arith.select %10, %22, %23 : vector<4x128xi1>, vector<4x128xf32>
    %c0_8 = arith.constant 0 : index
    %c0_9 = arith.constant 0 : index
    %c0_10 = arith.constant 0 : index
    %25 = vector.load %arg3[%c0_8, %c0_9, %c0_10] : memref<1x1x128xf32, #tpu.memory_space<vmem>>, vector<1x1x128xf32>
    %cst_11 = arith.constant dense<0.000000e+00> : vector<128xf32>
    %26 = vector.multi_reduction <add>, %24, %cst_11 [0] : vector<4x128xf32> to vector<128xf32>
    %27 = vector.shape_cast %26 : vector<128xf32> to vector<1x128xf32>
    %28 = vector.shape_cast %27 : vector<1x128xf32> to vector<1x1x128xf32>
    %29 = arith.addf %25, %28 : vector<1x1x128xf32>
    %c0_12 = arith.constant 0 : index
    %c0_13 = arith.constant 0 : index
    %c0_14 = arith.constant 0 : index
    %30 = vector.load %arg3[%c0_12, %c0_13, %c0_14] : memref<1x1x128xf32, #tpu.memory_space<vmem>>, vector<1x1x128xf32>
    tpu.vector_store %arg3[%c0_12, %c0_13, %c0_14], %29 {strides = array<i32>} : memref<1x1x128xf32, #tpu.memory_space<vmem>>, vector<1x1x128xf32>,
    %c0_15 = arith.constant 0 : index
    %c0_16 = arith.constant 0 : index
    %c0_17 = arith.constant 0 : index
    %31 = vector.load %arg4[%c0_15, %c0_16, %c0_17] : memref<1x1x128xf32, #tpu.memory_space<vmem>>, vector<1x1x128xf32>
    %32 = arith.mulf %24, %24 : vector<4x128xf32>
    %cst_18 = arith.constant dense<0.000000e+00> : vector<128xf32>
    %33 = vector.multi_reduction <add>, %32, %cst_18 [0] : vector<4x128xf32> to vector<128xf32>
    %34 = vector.shape_cast %33 : vector<128xf32> to vector<1x128xf32>
    %35 = vector.shape_cast %34 : vector<1x128xf32> to vector<1x1x128xf32>
    %36 = arith.addf %31, %35 : vector<1x1x128xf32>
    %c0_19 = arith.constant 0 : index
    %c0_20 = arith.constant 0 : index
    %c0_21 = arith.constant 0 : index
    %37 = vector.load %arg4[%c0_19, %c0_20, %c0_21] : memref<1x1x128xf32, #tpu.memory_space<vmem>>, vector<1x1x128xf32>
    tpu.vector_store %arg4[%c0_19, %c0_20, %c0_21], %36 {strides = array<i32>} : memref<1x1x128xf32, #tpu.memory_space<vmem>>, vector<1x1x128xf32>,
    return
  }
  func.func @transform_0(%arg0: i32, %arg1: i32) -> (i32, i32) {
    %c1_i32 = arith.constant 1 : i32
    %0 = arith.muli %arg0, %c1_i32 : i32
    %1 = arith.addi %0, %arg1 : i32
    %c0_i32 = arith.constant 0 : i32
    %2 = arith.minsi %1, %c0_i32 : i32
    %c0_i32_0 = arith.constant 0 : i32
    %c0_i32_1 = arith.constant 0 : i32
    return %2, %c0_i32_0 : i32, i32
  }
  func.func @transform_1(%arg0: i32, %arg1: i32) -> (i32, i32, i32) {
    %c0_i32 = arith.constant 0 : i32
    %c0_i32_0 = arith.constant 0 : i32
    %c0_i32_1 = arith.constant 0 : i32
    return %arg0, %c0_i32, %c0_i32_0 : i32, i32, i32
  }
  func.func @transform_2(%arg0: i32, %arg1: i32) -> (i32, i32, i32) {
    %c0_i32 = arith.constant 0 : i32
    %c0_i32_0 = arith.constant 0 : i32
    %c0_i32_1 = arith.constant 0 : i32
    return %arg0, %c0_i32, %c0_i32_0 : i32, i32, i32
  }
}

</mosaic_0001>

<llo_original>
// kernel: tpu_custom_call.1
$region0: #{tpu_custom_call.1}
  #allocation0 [shape = 'u32[]', space=smem, size = 0x4, offset = 0x4, fixed_abs, tag = 'smem constant byte address 0x4 - core index']
  #allocation1 [shape = 'u32[144,128]{1,0:T(1,128)}', space=vmem, size = 0x12000, scoped, tag = 'internal scratch']
  %s0 = inlined_call_operand.hbm [shape: f32[4,128], index: 0, kind: input, shape index: {}]
  %s1 = inlined_call_operand.hbm [shape: f32[1,1,128], index: 1, kind: output, shape index: {0}]
  %s2 = inlined_call_operand.hbm [shape: f32[1,1,128], index: 2, kind: output, shape index: {1}]
  %3 = xla_tuple %s1, %s2
  %s4 = sld [smem:[#allocation0]]
  $region30: #{tpu_custom_call.1} parent=0
    _
  %s6 = ssub.s32 1, %s4
  %s7 = scalar_select 0, %s6, %s4
  $region1: #{tpu_custom_call.1} parent=0
    #allocation2 [shape = 'u8[2048]{0}', space=vmem, size = 0x800, scoped, tag = 'input window, operand 0, single buffered']
    #allocation3 [shape = 's32[1]{0}', space=sflag, size = 0x4, scoped, tag = 'scoped memory for tpu_custom_call.1']
    #allocation4 [shape = 's32[1]{0}', space=sflag, size = 0x4, scoped, tag = 'scoped memory for tpu_custom_call.1']
    #allocation5 [shape = 'u8[512]{0}', space=vmem, size = 0x400, scoped, tag = 'output window, operand 0, single buffered']
    #allocation6 [shape = 'u8[512]{0}', space=vmem, size = 0x400, scoped, tag = 'output window, operand 1, single buffered']
    #allocation7 [shape = 's32[1]{0}', space=sflag, size = 0x4, scoped, tag = 'scoped memory for tpu_custom_call.1']
    %8 = vsyncpa [#allocation3], 0
    %9 = vsyncpa [#allocation4], 0
    %10 = vsyncpa [#allocation7], 0
    // Predicated region
    $region2: #{tpu_custom_call.1} parent=1 // pred_check
      _
    $region3: #{tpu_custom_call.1} parent=1 // pred_check_branch
      %12 = sbr.rel (0) target = $region5
    $region4: #{tpu_custom_call.1} parent=1 // pred_region
      %s13 = sadd.s32 0, 0
      %p14 = scmp.lt.s32.totalorder %s13, 0
      %s15 = scalar_select %p14, %s13, 0
      %s17 = ssub.s32 64, 64
      %18 = vsyncadd [#allocation3], %s17
      %s19 = smul.addr %s15, 64
      %s20 = scalar_lea.hbm %s0, %s19
      %s22 = sshll.u32 [#allocation2], 4
      %s23 = int_to_ptr.vmem [resolvable:$true] %s22
      %25 = dma.hbm_to_vmem [thread:$0]  %s20, 64, %s23, [#allocation3]
    $region5: #{tpu_custom_call.1} parent=1 // pred_fallthru
      _
    // Predicated region
    $region6: #{tpu_custom_call.1} parent=1 // pred_check
      _
    $region7: #{tpu_custom_call.1} parent=1 // pred_check_branch
      %27 = sbr.rel (0) target = $region9
    $region8: #{tpu_custom_call.1} parent=1 // pred_region
      %28 = dma.done [#allocation3], 64
    $region9: #{tpu_custom_call.1} parent=1 // pred_fallthru
      _
    %s29 = sadd.s32 0, 0
    %p30 = scmp.lt.s32.totalorder %s29, 0
    %s31 = scalar_select %p30, %s29, 0
    %p32 = scmp.eq.s32.totalorder 0, 0
    // Predicated region
    $region10: #{tpu_custom_call.1} parent=1 // pred_check
      %p33 = pneg %p32
    $region11: #{tpu_custom_call.1} parent=1 // pred_check_branch
      %35 = sbr.rel (%p33) target = $region13
    $region12: #{tpu_custom_call.1} parent=1 // pred_region
      %36 = vst [vmem:[#allocation5] sm:$0x1] 0.0
      %37 = vst [vmem:[#allocation6] sm:$0x1] 0.0
    $region13: #{tpu_custom_call.1} parent=1 // pred_fallthru
      _
    %s38 = sadd.s32 0, 0
    %s39 = smul.u32 %s38, 4
    %v40 = vlaneseq
    %v41 = vshrl.u32 %v40, 7
    %v42 = vstv %s39
    %v43 = vadd.s32 %v41, %v42
    %vm44 = vcmp.lt.s32.totalorder %v43, 4
    %v45 = vld [vmem:[#allocation2] sm:$0xf]
    %vm46 = vcmp.ne.f32.partialorder %v45, %v45
    %v47 = vsel %vm46, 0.0, %v45
    %vm48 = vcmp.eq.f32.partialorder %v47, inf
    %v49 = vsel %vm48, 3.4028235e+38, %v47
    %vm50 = vcmp.eq.f32.partialorder %v49, -inf
    %v51 = vsel %vm50, -3.4028235e+38, %v49
    %v52 = vsel %vm44, %v51, 0.0
    %v53 = vld [vmem:[#allocation5] sm:$0x1]
    %vm54 = vcmask 1043456
    %v55 = vsel %vm54, %v52, 0.0
    %v56 = vrot.slane %v55, 4
    %v57 = vadd.f32 %v55, %v56
    %v58 = vrot.slane %v57, 2
    %v59 = vadd.f32 %v57, %v58
    %v60 = vrot.slane %v59, 1
    %v61 = vadd.f32 %v59, %v60
    %v62 = vadd.f32 %v53, %v61
    %63 = vst [vmem:[#allocation5] sm:$0x1] %v62
    %v64 = vld [vmem:[#allocation6] sm:$0x1]
    %v65 = vmul.f32 %v52, %v52
    %v66 = vsel %vm54, %v65, 0.0
    %v67 = vrot.slane %v66, 4
    %v68 = vadd.f32 %v66, %v67
    %v69 = vrot.slane %v68, 2
    %v70 = vadd.f32 %v68, %v69
    %v71 = vrot.slane %v70, 1
    %v72 = vadd.f32 %v70, %v71
    %v73 = vadd.f32 %v64, %v72
    %74 = vst [vmem:[#allocation6] sm:$0x1] %v73
    // Predicated region
    $region14: #{tpu_custom_call.1} parent=1 // pred_check
      _
    $region15: #{tpu_custom_call.1} parent=1 // pred_check_branch
      %76 = sbr.rel (0) target = $region17
    $region16: #{tpu_custom_call.1} parent=1 // pred_region
      %s78 = ssub.s32 16, 16
      %79 = vsyncadd [#allocation4], %s78
      %s81 = sshll.u32 [#allocation5], 4
      %s82 = int_to_ptr.vmem [resolvable:$true] %s81
      %84 = dma.vmem_to_hbm [thread:$0]  %s82, 16, %s1, [#allocation4]
    $region17: #{tpu_custom_call.1} parent=1 // pred_fallthru
      _
    // Predicated region
    $region18: #{tpu_custom_call.1} parent=1 // pred_check
      _
    $region19: #{tpu_custom_call.1} parent=1 // pred_check_branch
      %86 = sbr.rel (0) target = $region21
    $region20: #{tpu_custom_call.1} parent=1 // pred_region
      %s88 = ssub.s32 16, 16
      %89 = vsyncadd [#allocation7], %s88
      %s91 = sshll.u32 [#allocation6], 4
      %s92 = int_to_ptr.vmem [resolvable:$true] %s91
      %94 = dma.vmem_to_hbm [thread:$0]  %s92, 16, %s2, [#allocation7]
    $region21: #{tpu_custom_call.1} parent=1 // pred_fallthru
      _
    // Predicated region
    $region22: #{tpu_custom_call.1} parent=1 // pred_check
      _
    $region23: #{tpu_custom_call.1} parent=1 // pred_check_branch
      %96 = sbr.rel (0) target = $region25
    $region24: #{tpu_custom_call.1} parent=1 // pred_region
      %97 = dma.done [#allocation4], 16
    $region25: #{tpu_custom_call.1} parent=1 // pred_fallthru
      _
    // Predicated region
    $region26: #{tpu_custom_call.1} parent=1 // pred_check
      _
    $region27: #{tpu_custom_call.1} parent=1 // pred_check_branch
      %99 = sbr.rel (0) target = $region29
    $region28: #{tpu_custom_call.1} parent=1 // pred_region
      %100 = dma.done [#allocation7], 16
    $region29: #{tpu_custom_call.1} parent=1 // pred_fallthru
      _
    %101 = vsyncpa [#allocation3], 1
    %102 = vsyncpa [#allocation4], 1
    %103 = vsyncpa [#allocation7], 1

</llo_original>
